<compile_context>
chip_gen: v7x
topology: tpu7x:2x2x1
jax: 0.10.0
libtpu: 0.0.40
codegen_flags: <defaults>
</compile_context>

<pallas_src>
import math

import jax
import jax.numpy as jnp
from jax.experimental import pallas as pl
from jax.experimental.pallas import tpu as pltpu


def _round_up(x, m):
    return (x + m - 1) // m * m


def _scalar_output_kernel(x_ref, w_ref, b_ref, o_ref):
    # x_ref: (tm, dim_in) VMEM      w_ref: (1, dim_in) VMEM (resident)
    # b_ref: (1,) SMEM f32          o_ref: (1, tm) VMEM (lane-dense row)
    x = x_ref[...].astype(jnp.float32)
    w = w_ref[...].astype(jnp.float32)
    # VPU multiply + XLU lane reduction (no MXU), f32 accumulation.
    acc = jnp.sum(x * w, axis=-1, keepdims=True)          # (tm, 1) f32
    row = acc[:, 0] + b_ref[0]                             # (tm,) f32
    o_ref[0, :] = row.astype(o_ref.dtype)                  # lane-dense store


def scalar_output(x, weight, bias, *, squeeze_output=False, tm=None, out_dtype=None):
    """Forward pass of ScalarOutput: x (*, dim_in) -> (*, 1) [or (*) if squeezed].

    weight: (1, dim_in) (torch nn.Linear convention), bias: (1,).
    """
    *lead, dim_in = x.shape
    M = int(math.prod(lead)) if lead else 1
    x2 = x.reshape(M, dim_in)
    out_dtype = x.dtype if out_dtype is None else jnp.dtype(out_dtype)
    itemsize = jnp.dtype(x.dtype).itemsize
    w_itemsize = jnp.dtype(weight.dtype).itemsize
    out_itemsize = jnp.dtype(out_dtype).itemsize

    # ---- VMEM-resident footprints (lane axis pads to 128 in VMEM) -----------
    dim_pad = _round_up(dim_in, 128)
    row_in = dim_pad * itemsize        # one resident input row
    row_f32 = dim_pad * 4              # possible materialized f32 intermediate

    # ---- generation-aware VMEM capacity --------------------------------------
    try:
        vmem_cap = int(pltpu.get_tpu_info().vmem_capacity_bytes)
    except Exception:
        vmem_cap = 64 << 20            # assume the smallest (v7x per-TC)

    # ---- row-tile selection ---------------------------------------------------
    # Per-tile cost ~ 2 * row_in (double-buffered x stream) + row_f32
    # (intermediate); rows a multiple of 128 so output blocks are lane-dense.
    if tm is None:
        budget = min(max(vmem_cap // 5, 8 << 20), 20 << 20)
        tm = (budget // max(2 * row_in + row_f32, 1)) // 128 * 128
        tm = min(max(tm, 128), _round_up(max(M, 1), 128))
        if M > 256:
            # keep >= 2 row tiles so the "parallel" axis can split across both
            # TensorCores on v7x (near-free on single-TC chips).
            tm = min(tm, max(_round_up(pl.cdiv(M, 2), 128), 128))
        tm = max(tm, 128)
    else:
        tm = max(128, _round_up(int(tm), 128))

    grid = pl.cdiv(M, tm)              # ragged last block clipped by Pallas

    w_row = weight.reshape(1, dim_in)
    b_vec = bias.reshape(1).astype(jnp.float32)

    # VMEM budget hint: x double-buffer + f32 intermediate + resident weight
    # + output rows, with slack; clamp well below physical VMEM.
    vmem_est = (2 * tm * row_in + tm * row_f32
                + 2 * dim_pad * w_itemsize + 2 * 8 * tm * out_itemsize)
    vmem_limit = int(min(max(vmem_est + (4 << 20), 16 << 20),
                         max(vmem_cap - (16 << 20), 16 << 20)))

    cost = pl.CostEstimate(
        flops=2 * M * dim_in,
        transcendentals=0,
        bytes_accessed=M * dim_in * itemsize + dim_in * w_itemsize + M * out_itemsize,
    )

    out2d = pl.pallas_call(
        _scalar_output_kernel,
        out_shape=jax.ShapeDtypeStruct((1, M), out_dtype),
        grid_spec=pltpu.PrefetchScalarGridSpec(
            num_scalar_prefetch=0,
            grid=(grid,),
            in_specs=[
                pl.BlockSpec((tm, dim_in), lambda i: (i, 0)),        # x row tile
                pl.BlockSpec((1, dim_in), lambda i: (0, 0)),         # weight (resident)
                pl.BlockSpec(memory_space=pltpu.MemorySpace.SMEM),   # bias scalar
            ],
            out_specs=pl.BlockSpec((1, tm), lambda i: (0, i)),       # lane-dense row
        ),
        compiler_params=pltpu.CompilerParams(
            dimension_semantics=("parallel",),
            vmem_limit_bytes=vmem_limit,
        ),
        cost_estimate=cost,
    )(x2, w_row, b_vec)

    out = out2d[0, :].reshape(*lead, 1)
    if squeeze_output:
        out = out.squeeze(-1)
    return out
    # TODO(synk): for very large dim_in (>= ~16K f32) add an inner "arbitrary"
    # K grid axis with an f32 (1, tm) accumulator (pl.when init/finalize) so the
    # tile stays within v7x's 64 MiB VMEM instead of growing the row block.


if __name__ == "__main__":
    key = jax.random.PRNGKey(0)
    k_x, k_w, k_b, k_x2 = jax.random.split(key, 4)

    batch, seq, dim_in = 2, 8, 32
    bound = 1.0 / math.sqrt(dim_in)
    weight = jax.random.uniform(k_w, (1, dim_in), jnp.float32, -bound, bound)
    bias = jax.random.uniform(k_b, (1,), jnp.float32, -bound, bound)

    # Small shape: single-tile (ragged, clipped) path.
    x = jax.random.normal(k_x, (batch, seq, dim_in), jnp.float32)
    out = jax.block_until_ready(scalar_output(x, weight, bias, squeeze_output=False))
    assert out.shape == (batch, seq, 1), out.shape
    ref = x @ weight.reshape(dim_in, 1) + bias
    assert jnp.allclose(out, ref, atol=1e-5, rtol=1e-5)

    out_sq = jax.block_until_ready(scalar_output(x, weight, bias, squeeze_output=True))
    assert out_sq.shape == (batch, seq), out_sq.shape
    assert jnp.allclose(out_sq, ref.squeeze(-1), atol=1e-5, rtol=1e-5)

    # Multi-tile + ragged last block path (tm=128 -> grid of 3, M=300, no pad).
    xb = jax.random.normal(k_x2, (3, 100, dim_in), jnp.float32)
    outb = jax.block_until_ready(scalar_output(xb, weight, bias, tm=128))
    refb = xb @ weight.reshape(dim_in, 1) + bias
    assert outb.shape == (3, 100, 1), outb.shape
    assert jnp.allclose(outb, refb, atol=1e-5, rtol=1e-5)

    print("KERNEL_OK")
</pallas_src>

<mosaic_0001>
module attributes {stable_mosaic.version = 11 : i64} {
  func.func @_scalar_output_kernel(%arg0: i32, %arg1: memref<128x32xf32, #tpu.memory_space<vmem>>, %arg2: memref<1x32xf32, #tpu.memory_space<vmem>>, %arg3: memref<1xf32, #tpu.memory_space<smem>>, %arg4: memref<1x128xf32, #tpu.memory_space<vmem>>) attributes {dimension_semantics = [#tpu.dimension_semantics<parallel>], iteration_bounds = array<i64: 1>, scalar_prefetch = 0 : i64, scratch_operands = 0 : i64, tpu.core_type = #tpu.core_type<tc>, window_params = [{transform_indices = @transform_0, window_bounds = array<i64: 128, 32>}, {pipeline_mode = #tpu.pipeline_mode<synchronous>, transform_indices = @transform_1, window_bounds = array<i64: 1, 32>}, {transform_indices = @transform_2, window_bounds = array<i64: 1>}, {transform_indices = @transform_3, window_bounds = array<i64: 1, 128>}]} {
    %c0 = arith.constant 0 : index
    %c0_0 = arith.constant 0 : index
    %0 = vector.load %arg1[%c0, %c0_0] : memref<128x32xf32, #tpu.memory_space<vmem>>, vector<128x32xf32>
    %c0_1 = arith.constant 0 : index
    %c0_2 = arith.constant 0 : index
    %1 = vector.load %arg2[%c0_1, %c0_2] : memref<1x32xf32, #tpu.memory_space<vmem>>, vector<1x32xf32>
    %2 = vector.broadcast %1 : vector<1x32xf32> to vector<128x32xf32>
    %3 = arith.mulf %0, %2 : vector<128x32xf32>
    %cst = arith.constant dense<0.000000e+00> : vector<128xf32>
    %4 = vector.multi_reduction <add>, %3, %cst [1] : vector<128x32xf32> to vector<128xf32>
    %5 = vector.shape_cast %4 : vector<128xf32> to vector<128x1xf32>
    %6 = vector.shape_cast %5 : vector<128x1xf32> to vector<128xf32>
    %c0_3 = arith.constant 0 : index
    %7 = memref.load %arg3[%c0_3] : memref<1xf32, #tpu.memory_space<smem>>
    %8 = vector.broadcast %7 : f32 to vector<128xf32>
    %9 = arith.addf %6, %8 : vector<128xf32>
    %c0_4 = arith.constant 0 : index
    %c0_5 = arith.constant 0 : index
    %10 = vector.load %arg4[%c0_4, %c0_5] : memref<1x128xf32, #tpu.memory_space<vmem>>, vector<1x128xf32>
    %11 = vector.shape_cast %10 : vector<1x128xf32> to vector<128xf32>
    %12 = vector.shape_cast %9 : vector<128xf32> to vector<1x128xf32>
    tpu.vector_store %arg4[%c0_4, %c0_5], %12 {strides = array<i32>} : memref<1x128xf32, #tpu.memory_space<vmem>>, vector<1x128xf32>,
    return
  }
  func.func @transform_0(%arg0: i32) -> (i32, i32) {
    %c0_i32 = arith.constant 0 : i32
    %c0_i32_0 = arith.constant 0 : i32
    return %arg0, %c0_i32 : i32, i32
  }
  func.func @transform_1(%arg0: i32) -> (i32, i32) {
    %c0_i32 = arith.constant 0 : i32
    %c0_i32_0 = arith.constant 0 : i32
    %c0_i32_1 = arith.constant 0 : i32
    return %c0_i32, %c0_i32_0 : i32, i32
  }
  func.func @transform_2(%arg0: i32) -> i32 {
    %c0_i32 = arith.constant 0 : i32
    %c0_i32_0 = arith.constant 0 : i32
    return %c0_i32 : i32
  }
  func.func @transform_3(%arg0: i32) -> (i32, i32) {
    %c0_i32 = arith.constant 0 : i32
    %c0_i32_0 = arith.constant 0 : i32
    return %c0_i32, %arg0 : i32, i32
  }
}

</mosaic_0001>

<llo_original>
// kernel: tpu_custom_call.1
$region0: #{tpu_custom_call.1}
  #allocation0 [shape = 'u32[]', space=smem, size = 0x4, offset = 0x4, fixed_abs, tag = 'smem constant byte address 0x4 - core index']
  #allocation1 [shape = 'u32[144,128]{1,0:T(1,128)}', space=vmem, size = 0x12000, scoped, tag = 'internal scratch']
  #allocation2 [shape = 'f32[1]{0:T(128)S(6)}', space=smem, size = 0x200, scoped, tag = 'scoped memory for tpu_custom_call.1']
  %s0 = inlined_call_operand.hbm [shape: f32[16,32], index: 0, kind: input, shape index: {}]
  %s1 = inlined_call_operand.vmem [shape: f32[1,32], index: 1, kind: input, shape index: {}]
  %s2 = inlined_call_operand.<no memory space> [shape: f32[1], index: 2, kind: input, shape index: {}]
  %s3 = inlined_call_operand.hbm [shape: f32[1,16], index: 3, kind: output, shape index: {}]
  %s4 = sld [smem:[#allocation0]]
  $region26: #{tpu_custom_call.1} parent=0
    _
  %s6 = ssub.s32 1, %s4
  %s7 = scalar_select 0, %s6, %s4
  %8 = sst [smem:[#allocation2]] %s2
  $region1: #{tpu_custom_call.1} parent=0
    #allocation3 [shape = 'u8[65536]{0}', space=vmem, size = 0x10000, scoped, tag = 'input window, operand 0, single buffered']
    #allocation4 [shape = 's32[1]{0}', space=sflag, size = 0x4, scoped, tag = 'scoped memory for tpu_custom_call.1']
    #allocation5 [shape = 's32[1]{0}', space=sflag, size = 0x4, scoped, tag = 'scoped memory for tpu_custom_call.1']
    #allocation6 [shape = 'u8[512]{0}', space=vmem, size = 0x400, scoped, tag = 'output window, operand 0, single buffered']
    %9 = vsyncpa [#allocation4], 0
    %10 = vsyncpa [#allocation5], 0
    // Predicated region
    $region2: #{tpu_custom_call.1} parent=1 // pred_check
      _
    $region3: #{tpu_custom_call.1} parent=1 // pred_check_branch
      %12 = sbr.rel (0) target = $region5
    $region4: #{tpu_custom_call.1} parent=1 // pred_region
      %s14 = ssub.s32 2048, 256
      %15 = vsyncadd [#allocation4], %s14
      %s16 = sshll.u32 [#allocation3], 4
      %s17 = int_to_ptr.vmem [resolvable:$true] %s16
      %22 = dma.hbm_to_vmem [thread:$0]  %s0, 256, %s17, [#allocation4], 128, 128, 8
    $region5: #{tpu_custom_call.1} parent=1 // pred_fallthru
      _
    // Predicated region
    $region6: #{tpu_custom_call.1} parent=1 // pred_check
      _
    $region7: #{tpu_custom_call.1} parent=1 // pred_check_branch
      %24 = sbr.rel (0) target = $region9
    $region8: #{tpu_custom_call.1} parent=1 // pred_region
      _
    $region9: #{tpu_custom_call.1} parent=1 // pred_fallthru
      _
    // Predicated region
    $region10: #{tpu_custom_call.1} parent=1 // pred_check
      _
    $region11: #{tpu_custom_call.1} parent=1 // pred_check_branch
      %26 = sbr.rel (0) target = $region13
    $region12: #{tpu_custom_call.1} parent=1 // pred_region
      _
    $region13: #{tpu_custom_call.1} parent=1 // pred_fallthru
      _
    // Predicated region
    $region14: #{tpu_custom_call.1} parent=1 // pred_check
      _
    $region15: #{tpu_custom_call.1} parent=1 // pred_check_branch
      %28 = sbr.rel (0) target = $region17
    $region16: #{tpu_custom_call.1} parent=1 // pred_region
      %29 = dma.done [#allocation4], 2048
    $region17: #{tpu_custom_call.1} parent=1 // pred_fallthru
      _
    %v30 = vld [vmem:[#allocation3] sm:$0xff]
    %v31 = vld [vmem:[#allocation3 + $0x8] sm:$0xff]
    %v32 = vld [vmem:[#allocation3 + $0x10] sm:$0xff]
    %v33 = vld [vmem:[#allocation3 + $0x18] sm:$0xff]
    %v34 = vld [vmem:[#allocation3 + $0x20] sm:$0xff]
    %v35 = vld [vmem:[#allocation3 + $0x28] sm:$0xff]
    %v36 = vld [vmem:[#allocation3 + $0x30] sm:$0xff]
    %v37 = vld [vmem:[#allocation3 + $0x38] sm:$0xff]
    %v38 = vld [vmem:[#allocation3 + $0x40] sm:$0xff]
    %v39 = vld [vmem:[#allocation3 + $0x48] sm:$0xff]
    %v40 = vld [vmem:[#allocation3 + $0x50] sm:$0xff]
    %v41 = vld [vmem:[#allocation3 + $0x58] sm:$0xff]
    %v42 = vld [vmem:[#allocation3 + $0x60] sm:$0xff]
    %v43 = vld [vmem:[#allocation3 + $0x68] sm:$0xff]
    %v44 = vld [vmem:[#allocation3 + $0x70] sm:$0xff]
    %v45 = vld [vmem:[#allocation3 + $0x78] sm:$0xff]
    %v46 = vld [vmem:[%s1] sm:$0x1]
    %v48 = vlaneseq
    %v49 = vshrl.u32 %v48, 7
    %v50 = vsub.s32 0, %v49
    %v51 = vrot.slane %v46, %v50
    %v53 = vmul.f32 %v30, %v51
    %v54 = vmul.f32 %v31, %v51
    %v55 = vmul.f32 %v32, %v51
    %v56 = vmul.f32 %v33, %v51
    %v57 = vmul.f32 %v34, %v51
    %v58 = vmul.f32 %v35, %v51
    %v59 = vmul.f32 %v36, %v51
    %v60 = vmul.f32 %v37, %v51
    %v61 = vmul.f32 %v38, %v51
    %v62 = vmul.f32 %v39, %v51
    %v63 = vmul.f32 %v40, %v51
    %v64 = vmul.f32 %v41, %v51
    %v65 = vmul.f32 %v42, %v51
    %v66 = vmul.f32 %v43, %v51
    %v67 = vmul.f32 %v44, %v51
    %v68 = vmul.f32 %v45, %v51
    %vm69 = vcmask 261120
    %v70 = vsel %vm69, %v53, 0.0
    %71 = vadd.xlane.f32.xlu0 %v70
    %v72 = vpop.xlane.xlu0 %71
    %v73 = vsel %vm69, %v54, 0.0
    %74 = vadd.xlane.f32.xlu0 %v73
    %v75 = vpop.xlane.xlu0 %74
    %v76 = vsel %vm69, %v55, 0.0
    %77 = vadd.xlane.f32.xlu0 %v76
    %v78 = vpop.xlane.xlu0 %77
    %v79 = vsel %vm69, %v56, 0.0
    %80 = vadd.xlane.f32.xlu0 %v79
    %v81 = vpop.xlane.xlu0 %80
    %v82 = vsel %vm69, %v57, 0.0
    %83 = vadd.xlane.f32.xlu0 %v82
    %v84 = vpop.xlane.xlu0 %83
    %v85 = vsel %vm69, %v58, 0.0
    %86 = vadd.xlane.f32.xlu0 %v85
    %v87 = vpop.xlane.xlu0 %86
    %v88 = vsel %vm69, %v59, 0.0
    %89 = vadd.xlane.f32.xlu0 %v88
    %v90 = vpop.xlane.xlu0 %89
    %v91 = vsel %vm69, %v60, 0.0
    %92 = vadd.xlane.f32.xlu0 %v91
    %v93 = vpop.xlane.xlu0 %92
    %v94 = vsel %vm69, %v61, 0.0
    %95 = vadd.xlane.f32.xlu0 %v94
    %v96 = vpop.xlane.xlu0 %95
    %v97 = vsel %vm69, %v62, 0.0
    %98 = vadd.xlane.f32.xlu0 %v97
    %v99 = vpop.xlane.xlu0 %98
    %v100 = vsel %vm69, %v63, 0.0
    %101 = vadd.xlane.f32.xlu0 %v100
    %v102 = vpop.xlane.xlu0 %101
    %v103 = vsel %vm69, %v64, 0.0
    %104 = vadd.xlane.f32.xlu0 %v103
    %v105 = vpop.xlane.xlu0 %104
    %v106 = vsel %vm69, %v65, 0.0
    %107 = vadd.xlane.f32.xlu0 %v106
    %v108 = vpop.xlane.xlu0 %107
    %v109 = vsel %vm69, %v66, 0.0
    %110 = vadd.xlane.f32.xlu0 %v109
    %v111 = vpop.xlane.xlu0 %110
    %v112 = vsel %vm69, %v67, 0.0
    %113 = vadd.xlane.f32.xlu0 %v112
    %v114 = vpop.xlane.xlu0 %113
    %v115 = vsel %vm69, %v68, 0.0
    %116 = vadd.xlane.f32.xlu0 %v115
    %v117 = vpop.xlane.xlu0 %116
    %s118 = sld [smem:[#allocation2]]
    %v119 = vstv %s118
    %v120 = vadd.f32 %v72, %v119
    %v121 = vadd.f32 %v75, %v119
    %v122 = vadd.f32 %v78, %v119
    %v123 = vadd.f32 %v81, %v119
    %v124 = vadd.f32 %v84, %v119
    %v125 = vadd.f32 %v87, %v119
    %v126 = vadd.f32 %v90, %v119
    %v127 = vadd.f32 %v93, %v119
    %v128 = vadd.f32 %v96, %v119
    %v129 = vadd.f32 %v99, %v119
    %v130 = vadd.f32 %v102, %v119
    %v131 = vadd.f32 %v105, %v119
    %v132 = vadd.f32 %v108, %v119
    %v133 = vadd.f32 %v111, %v119
    %v134 = vadd.f32 %v114, %v119
    %v135 = vadd.f32 %v117, %v119
    %v152 = vlaneseq
    %v153 = vand.u32 %v152, 127
    %v154 = vlaneseq
    %v155 = vshrl.u32 %v154, 7
    %v156 = vsub.s32 %v153, %v155
    %v157 = vrot.slane %v120, %v156
    %v158 = vadd.s32 %v153, 4294967288
    %v159 = vlaneseq
    %v160 = vshrl.u32 %v159, 7
    %v161 = vsub.s32 %v158, %v160
    %v162 = vrot.slane %v121, %v161
    %vm163 = vcmask 130112
    %v164 = vsel %vm163, %v162, %v157
    %v165 = vadd.s32 %v153, 4294967280
    %v166 = vlaneseq
    %v167 = vshrl.u32 %v166, 7
    %v168 = vsub.s32 %v165, %v167
    %v169 = vrot.slane %v122, %v168
    %vm170 = vcmask 195712
    %v171 = vsel %vm170, %v169, %v164
    %v172 = vadd.s32 %v153, 4294967272
    %v173 = vlaneseq
    %v174 = vshrl.u32 %v173, 7
    %v175 = vsub.s32 %v172, %v174
    %v176 = vrot.slane %v123, %v175
    %vm177 = vcmask 261312
    %v178 = vsel %vm177, %v176, %v171
    %v179 = vadd.s32 %v153, 4294967264
    %v180 = vlaneseq
    %v181 = vshrl.u32 %v180, 7
    %v182 = vsub.s32 %v179, %v181
    %v183 = vrot.slane %v124, %v182
    %vm184 = vcmask 326912
    %v185 = vsel %vm184, %v183, %v178
    %v186 = vadd.s32 %v153, 4294967256
    %v187 = vlaneseq
    %v188 = vshrl.u32 %v187, 7
    %v189 = vsub.s32 %v186, %v188
    %v190 = vrot.slane %v125, %v189
    %vm191 = vcmask 392512
    %v192 = vsel %vm191, %v190, %v185
    %v193 = vadd.s32 %v153, 4294967248
    %v194 = vlaneseq
    %v195 = vshrl.u32 %v194, 7
    %v196 = vsub.s32 %v193, %v195
    %v197 = vrot.slane %v126, %v196
    %vm198 = vcmask 458112
    %v199 = vsel %vm198, %v197, %v192
    %v200 = vadd.s32 %v153, 4294967240
    %v201 = vlaneseq
    %v202 = vshrl.u32 %v201, 7
    %v203 = vsub.s32 %v200, %v202
    %v204 = vrot.slane %v127, %v203
    %vm205 = vcmask 523712
    %v206 = vsel %vm205, %v204, %v199
    %v207 = vadd.s32 %v153, 4294967232
    %v208 = vlaneseq
    %v209 = vshrl.u32 %v208, 7
    %v210 = vsub.s32 %v207, %v209
    %v211 = vrot.slane %v128, %v210
    %vm212 = vcmask 589312
    %v213 = vsel %vm212, %v211, %v206
    %v214 = vadd.s32 %v153, 4294967224
    %v215 = vlaneseq
    %v216 = vshrl.u32 %v215, 7
    %v217 = vsub.s32 %v214, %v216
    %v218 = vrot.slane %v129, %v217
    %vm219 = vcmask 654912
    %v220 = vsel %vm219, %v218, %v213
    %v221 = vadd.s32 %v153, 4294967216
    %v222 = vlaneseq
    %v223 = vshrl.u32 %v222, 7
    %v224 = vsub.s32 %v221, %v223
    %v225 = vrot.slane %v130, %v224
    %vm226 = vcmask 720512
    %v227 = vsel %vm226, %v225, %v220
    %v228 = vadd.s32 %v153, 4294967208
    %v229 = vlaneseq
    %v230 = vshrl.u32 %v229, 7
    %v231 = vsub.s32 %v228, %v230
    %v232 = vrot.slane %v131, %v231
    %vm233 = vcmask 786112
    %v234 = vsel %vm233, %v232, %v227
    %v235 = vadd.s32 %v153, 4294967200
    %v236 = vlaneseq
    %v237 = vshrl.u32 %v236, 7
    %v238 = vsub.s32 %v235, %v237
    %v239 = vrot.slane %v132, %v238
    %vm240 = vcmask 851712
    %v241 = vsel %vm240, %v239, %v234
    %v242 = vadd.s32 %v153, 4294967192
    %v243 = vlaneseq
    %v244 = vshrl.u32 %v243, 7
    %v245 = vsub.s32 %v242, %v244
    %v246 = vrot.slane %v133, %v245
    %vm247 = vcmask 917312
    %v248 = vsel %vm247, %v246, %v241
    %v249 = vadd.s32 %v153, 4294967184
    %v250 = vlaneseq
    %v251 = vshrl.u32 %v250, 7
    %v252 = vsub.s32 %v249, %v251
    %v253 = vrot.slane %v134, %v252
    %vm254 = vcmask 982912
    %v255 = vsel %vm254, %v253, %v248
    %v256 = vadd.s32 %v153, 4294967176
    %v257 = vlaneseq
    %v258 = vshrl.u32 %v257, 7
    %v259 = vsub.s32 %v256, %v258
    %v260 = vrot.slane %v135, %v259
    %vm261 = vcmask 1048512
    %v262 = vsel %vm261, %v260, %v255
    %264 = vst [vmem:[#allocation6] sm:$0x1] %v262
    // Predicated region
    $region18: #{tpu_custom_call.1} parent=1 // pred_check
      _
    $region19: #{tpu_custom_call.1} parent=1 // pred_check_branch
      %266 = sbr.rel (0) target = $region21
    $region20: #{tpu_custom_call.1} parent=1 // pred_region
      %s268 = ssub.s32 16, 16
      %269 = vsyncadd [#allocation5], %s268
      %s271 = sshll.u32 [#allocation6], 4
      %s272 = int_to_ptr.vmem [resolvable:$true] %s271
      %274 = dma.vmem_to_hbm [thread:$0]  %s272, 16, %s3, [#allocation5]
    $region21: #{tpu_custom_call.1} parent=1 // pred_fallthru
      _
    // Predicated region
    $region22: #{tpu_custom_call.1} parent=1 // pred_check
      _
    $region23: #{tpu_custom_call.1} parent=1 // pred_check_branch
      %276 = sbr.rel (0) target = $region25
    $region24: #{tpu_custom_call.1} parent=1 // pred_region
      %277 = dma.done [#allocation5], 16
    $region25: #{tpu_custom_call.1} parent=1 // pred_fallthru
      _
    %278 = vsyncpa [#allocation4], 1
    %279 = vsyncpa [#allocation5], 1

</llo_original>
